<compile_context>
chip_gen: v7x
topology: tpu7x:2x2x1
jax: 0.10.0
libtpu: 0.0.40
codegen_flags: <defaults>
</compile_context>

<pallas_src>
import jax
import jax.numpy as jnp
from jax.experimental import pallas as pl
from jax.experimental.pallas import tpu as pltpu

HIDDEN = 64          # logical hidden width (nn.Linear(..., 64))
LANE = 128           # TPU lane width; padded hidden feature width
SUBLANE = 8          # f32 sublane granularity
BF16_SUB = 16        # bf16 native tile rows (sublane packing)


def _round_up(n, m):
    return (n + m - 1) // m * m


def _cdiv(a, b):
    return (a + b - 1) // b


def qnetwork_kernel(x_ref, w_ref, b_ref, out_ref):
    # x_ref:  (tb, f_pad)              f32 batch tile (f_pad = round_up(state, 16))
    # w_ref:  (f_pad + 2*LANE, LANE)   bf16 packed [W1p; W2p; W3p], 16-row aligned sections
    # b_ref:  (SUBLANE, LANE)          f32, rows 0/1/2 = b1/b2/b3 (lane-padded, rest zero)
    # out_ref:(tb, a_pad)              f32, a_pad = round_up(action_size, 8)
    f_pad = x_ref.shape[1]
    a_pad = out_ref.shape[1]

    x = x_ref[...].astype(jnp.bfloat16)                 # bf16 MXU operand
    w1 = w_ref[0:f_pad, :]                              # (f_pad, 128) bf16, tile-aligned
    w2 = w_ref[f_pad:f_pad + LANE, :]                   # (128, 128)   bf16, tile-aligned
    w3 = w_ref[f_pad + LANE:f_pad + 2 * LANE, :]        # (128, 128)   bf16, tile-aligned
    b1 = b_ref[0:1, :]
    b2 = b_ref[1:2, :]
    b3 = b_ref[2:3, :]

    # bf16 operands, f32 accumulation; bias-add / ReLU in f32.
    h1 = jnp.maximum(jnp.dot(x, w1, preferred_element_type=jnp.float32) + b1, 0.0)
    h2 = jnp.maximum(
        jnp.dot(h1.astype(jnp.bfloat16), w2, preferred_element_type=jnp.float32) + b2, 0.0)
    h3 = jnp.maximum(
        jnp.dot(h2.astype(jnp.bfloat16), w3, preferred_element_type=jnp.float32) + b3, 0.0)

    # Narrow store: only the a_pad valid lanes go back to HBM (32 B/row, not 512 B/row).
    out_ref[...] = h3[:, :a_pad].astype(out_ref.dtype)


def init_params(key, state_size, action_size):
    """Mirror nn.Linear default init: U[-1/sqrt(fan_in), +1/sqrt(fan_in)].
    Weights stored as [in_features, out_features] so the kernel computes x @ W + b."""
    def linear(k, fan_in, fan_out):
        kw, kb = jax.random.split(k)
        bound = 1.0 / jnp.sqrt(fan_in)
        w = jax.random.uniform(kw, (fan_in, fan_out), jnp.float32, -bound, bound)
        b = jax.random.uniform(kb, (fan_out,), jnp.float32, -bound, bound)
        return w, b

    k1, k2, k3 = jax.random.split(key, 3)
    w1, b1 = linear(k1, state_size, HIDDEN)
    w2, b2 = linear(k2, HIDDEN, HIDDEN)
    w3, b3 = linear(k3, HIDDEN, action_size)
    return (w1, b1, w2, b2, w3, b3)


def pack_params(params, state_size, action_size):
    """Zero-pad every weight to 128 output lanes, align each section to 16 rows
    (bf16 native tile), stack into one bf16 weight buffer + one f32 bias buffer.
    Pad THEN cast so padding stays exact zeros in bf16 (no leakage into valid lanes)."""
    w1, b1, w2, b2, w3, b3 = params
    f_pad = _round_up(state_size, BF16_SUB)

    w1p = jnp.zeros((f_pad, LANE), jnp.float32).at[:state_size, :HIDDEN].set(w1)
    w2p = jnp.zeros((LANE, LANE), jnp.float32).at[:HIDDEN, :HIDDEN].set(w2)
    w3p = jnp.zeros((LANE, LANE), jnp.float32).at[:HIDDEN, :action_size].set(w3)
    w_packed = jnp.concatenate([w1p, w2p, w3p], axis=0).astype(jnp.bfloat16)

    b_packed = jnp.zeros((SUBLANE, LANE), jnp.float32)
    b_packed = b_packed.at[0, :HIDDEN].set(b1)
    b_packed = b_packed.at[1, :HIDDEN].set(b2)
    b_packed = b_packed.at[2, :action_size].set(b3)
    return w_packed, b_packed


def qnetwork_forward(x, w_packed, b_packed, *, action_size, block_batch=1024):
    batch, state_size = x.shape
    f_pad = w_packed.shape[0] - 2 * LANE
    a_pad = _round_up(action_size, SUBLANE)

    # At least 2 grid steps when the batch allows it (feeds both v7x TensorCores via
    # the "parallel" batch axis; harmless on single-TC v5e/v6e), and tile sized so
    # ragged batches don't over-pad.
    n_tiles = max(2, _cdiv(batch, block_batch))
    tb = max(SUBLANE, min(block_batch, _round_up(_cdiv(batch, n_tiles), SUBLANE)))
    batch_pad = _round_up(batch, tb)

    # Zero-copy fast path: only materialize a padded copy when shapes require it.
    if batch_pad != batch or f_pad != state_size:
        x_in = jnp.pad(x, ((0, batch_pad - batch), (0, f_pad - state_size)))
    else:
        x_in = x

    out = pl.pallas_call(
        qnetwork_kernel,
        out_shape=jax.ShapeDtypeStruct((batch_pad, a_pad), jnp.float32),
        grid=(batch_pad // tb,),
        in_specs=[
            pl.BlockSpec((tb, f_pad), lambda i: (i, 0)),               # x tile (pipelined)
            pl.BlockSpec((f_pad + 2 * LANE, LANE), lambda i: (0, 0)),  # packed weights (resident)
            pl.BlockSpec((SUBLANE, LANE), lambda i: (0, 0)),           # packed biases  (resident)
        ],
        out_specs=pl.BlockSpec((tb, a_pad), lambda i: (i, 0)),
        compiler_params=pltpu.CompilerParams(
            dimension_semantics=("parallel",)),
    )(x_in, w_packed, b_packed)

    # Slice only if padding was actually added.
    if batch_pad != batch or a_pad != action_size:
        out = out[:batch, :action_size]
    return out


def qnetwork_ref(x, params):
    w1, b1, w2, b2, w3, b3 = params
    h1 = jnp.maximum(x @ w1 + b1, 0.0)
    h2 = jnp.maximum(h1 @ w2 + b2, 0.0)
    # Final ReLU matches the PyTorch spec: `return torch.relu(self.fc3(x))`.
    return jnp.maximum(h2 @ w3 + b3, 0.0)


if __name__ == "__main__":
    key = jax.random.PRNGKey(0)
    k_params, k_x = jax.random.split(key)

    batch, state_size, action_size = 8, 8, 4
    params = init_params(k_params, state_size, action_size)
    w_packed, b_packed = pack_params(params, state_size, action_size)
    x = jax.random.normal(k_x, (batch, state_size), jnp.float32)

    out = qnetwork_forward(x, w_packed, b_packed, action_size=action_size)
    out = jax.block_until_ready(out)

    ref = qnetwork_ref(x, params)
    assert out.shape == (batch, action_size), out.shape
    # bf16 MXU operands with f32 accumulation -> relaxed tolerance vs the f32 reference.
    assert jnp.allclose(out, ref, atol=5e-2, rtol=5e-2), float(jnp.max(jnp.abs(out - ref)))
    print("KERNEL_OK")
</pallas_src>

<mosaic_0001>
module attributes {stable_mosaic.version = 11 : i64} {
  func.func @qnetwork_kernel(%arg0: i32, %arg1: memref<8x16xf32, #tpu.memory_space<vmem>>, %arg2: memref<272x128xbf16, #tpu.memory_space<vmem>>, %arg3: memref<8x128xf32, #tpu.memory_space<vmem>>, %arg4: memref<8x8xf32, #tpu.memory_space<vmem>>) attributes {dimension_semantics = [#tpu.dimension_semantics<parallel>], iteration_bounds = array<i64: 1>, scalar_prefetch = 0 : i64, scratch_operands = 0 : i64, tpu.core_type = #tpu.core_type<tc>, window_params = [{transform_indices = @transform_0, window_bounds = array<i64: 8, 16>}, {pipeline_mode = #tpu.pipeline_mode<synchronous>, transform_indices = @transform_1, window_bounds = array<i64: 272, 128>}, {pipeline_mode = #tpu.pipeline_mode<synchronous>, transform_indices = @transform_2, window_bounds = array<i64: 8, 128>}, {transform_indices = @transform_3, window_bounds = array<i64: 8, 8>}]} {
    %c0 = arith.constant 0 : index
    %c0_0 = arith.constant 0 : index
    %0 = vector.load %arg1[%c0, %c0_0] : memref<8x16xf32, #tpu.memory_space<vmem>>, vector<8x16xf32>
    %1 = arith.truncf %0 : vector<8x16xf32> to vector<8x16xbf16>
    %c0_1 = arith.constant 0 : index
    %c0_2 = arith.constant 0 : index
    %2 = vector.load %arg2[%c0_1, %c0_2] : memref<272x128xbf16, #tpu.memory_space<vmem>>, vector<16x128xbf16>
    %c16 = arith.constant 16 : index
    %c0_3 = arith.constant 0 : index
    %3 = vector.load %arg2[%c16, %c0_3] : memref<272x128xbf16, #tpu.memory_space<vmem>>, vector<128x128xbf16>
    %c144 = arith.constant 144 : index
    %c0_4 = arith.constant 0 : index
    %4 = vector.load %arg2[%c144, %c0_4] : memref<272x128xbf16, #tpu.memory_space<vmem>>, vector<128x128xbf16>
    %c0_5 = arith.constant 0 : index
    %c0_6 = arith.constant 0 : index
    %5 = vector.load %arg3[%c0_5, %c0_6] : memref<8x128xf32, #tpu.memory_space<vmem>>, vector<1x128xf32>
    %c1 = arith.constant 1 : index
    %c0_7 = arith.constant 0 : index
    %6 = vector.load %arg3[%c1, %c0_7] : memref<8x128xf32, #tpu.memory_space<vmem>>, vector<1x128xf32>
    %c2 = arith.constant 2 : index
    %c0_8 = arith.constant 0 : index
    %7 = vector.load %arg3[%c2, %c0_8] : memref<8x128xf32, #tpu.memory_space<vmem>>, vector<1x128xf32>
    %cst = arith.constant dense<0.000000e+00> : vector<8x128xf32>
    %8 = tpu.matmul %1, %2, %cst {dimension_numbers = #tpu.dot_dimension_numbers<[1], [0], [0], [1], [0, 0, 1, 1], [], []>} : vector<8x16xbf16>, vector<16x128xbf16>, vector<8x128xf32> -> vector<8x128xf32>
    %9 = vector.broadcast %5 : vector<1x128xf32> to vector<8x128xf32>
    %10 = arith.addf %8, %9 : vector<8x128xf32>
    %cst_9 = arith.constant 0.000000e+00 : f32
    %11 = vector.broadcast %cst_9 : f32 to vector<8x128xf32>
    %12 = arith.maximumf %10, %11 : vector<8x128xf32>
    %13 = arith.truncf %12 : vector<8x128xf32> to vector<8x128xbf16>
    %cst_10 = arith.constant dense<0.000000e+00> : vector<8x128xf32>
    %14 = tpu.matmul %13, %3, %cst_10 {dimension_numbers = #tpu.dot_dimension_numbers<[1], [0], [0], [1], [0, 0, 1, 1], [], []>} : vector<8x128xbf16>, vector<128x128xbf16>, vector<8x128xf32> -> vector<8x128xf32>
    %15 = vector.broadcast %6 : vector<1x128xf32> to vector<8x128xf32>
    %16 = arith.addf %14, %15 : vector<8x128xf32>
    %cst_11 = arith.constant 0.000000e+00 : f32
    %17 = vector.broadcast %cst_11 : f32 to vector<8x128xf32>
    %18 = arith.maximumf %16, %17 : vector<8x128xf32>
    %19 = arith.truncf %18 : vector<8x128xf32> to vector<8x128xbf16>
    %cst_12 = arith.constant dense<0.000000e+00> : vector<8x128xf32>
    %20 = tpu.matmul %19, %4, %cst_12 {dimension_numbers = #tpu.dot_dimension_numbers<[1], [0], [0], [1], [0, 0, 1, 1], [], []>} : vector<8x128xbf16>, vector<128x128xbf16>, vector<8x128xf32> -> vector<8x128xf32>
    %21 = vector.broadcast %7 : vector<1x128xf32> to vector<8x128xf32>
    %22 = arith.addf %20, %21 : vector<8x128xf32>
    %cst_13 = arith.constant 0.000000e+00 : f32
    %23 = vector.broadcast %cst_13 : f32 to vector<8x128xf32>
    %24 = arith.maximumf %22, %23 : vector<8x128xf32>
    %25 = vector.extract_strided_slice %24 {offsets = [0, 0], sizes = [8, 8], strides = [1, 1]} : vector<8x128xf32> to vector<8x8xf32>
    %c0_14 = arith.constant 0 : index
    %c0_15 = arith.constant 0 : index
    %26 = vector.load %arg4[%c0_14, %c0_15] : memref<8x8xf32, #tpu.memory_space<vmem>>, vector<8x8xf32>
    tpu.vector_store %arg4[%c0_14, %c0_15], %25 {strides = array<i32>} : memref<8x8xf32, #tpu.memory_space<vmem>>, vector<8x8xf32>,
    return
  }
  func.func @transform_0(%arg0: i32) -> (i32, i32) {
    %c0_i32 = arith.constant 0 : i32
    %c0_i32_0 = arith.constant 0 : i32
    return %arg0, %c0_i32 : i32, i32
  }
  func.func @transform_1(%arg0: i32) -> (i32, i32) {
    %c0_i32 = arith.constant 0 : i32
    %c0_i32_0 = arith.constant 0 : i32
    %c0_i32_1 = arith.constant 0 : i32
    return %c0_i32, %c0_i32_0 : i32, i32
  }
  func.func @transform_2(%arg0: i32) -> (i32, i32) {
    %c0_i32 = arith.constant 0 : i32
    %c0_i32_0 = arith.constant 0 : i32
    %c0_i32_1 = arith.constant 0 : i32
    return %c0_i32, %c0_i32_0 : i32, i32
  }
  func.func @transform_3(%arg0: i32) -> (i32, i32) {
    %c0_i32 = arith.constant 0 : i32
    %c0_i32_0 = arith.constant 0 : i32
    return %arg0, %c0_i32 : i32, i32
  }
}

</mosaic_0001>

<llo_original>
// kernel: tpu_custom_call.1
$region0: #{tpu_custom_call.1}
  #allocation0 [shape = 'u32[]', space=smem, size = 0x4, offset = 0x4, fixed_abs, tag = 'smem constant byte address 0x4 - core index']
  #allocation1 [shape = 'u32[144,128]{1,0:T(1,128)}', space=vmem, size = 0x12000, scoped, tag = 'internal scratch']
  %s0 = inlined_call_operand.hbm [shape: f32[8,16], index: 0, kind: input, shape index: {}]
  %s1 = inlined_call_operand.hbm [shape: bf16[272,128], index: 1, kind: input, shape index: {}]
  %s2 = inlined_call_operand.hbm [shape: f32[8,128], index: 2, kind: input, shape index: {}]
  %s3 = inlined_call_operand.hbm [shape: f32[8,8], index: 3, kind: output, shape index: {}]
  %s4 = sld [smem:[#allocation0]]
  $region34: #{tpu_custom_call.1} parent=0
    _
  %s6 = ssub.s32 1, %s4
  %s7 = scalar_select 0, %s6, %s4
  $region1: #{tpu_custom_call.1} parent=0
    #allocation2 [shape = 'u8[4096]{0}', space=vmem, size = 0x1000, scoped, tag = 'input window, operand 0, single buffered']
    #allocation3 [shape = 's32[1]{0}', space=sflag, size = 0x4, scoped, tag = 'scoped memory for tpu_custom_call.1']
    #allocation4 [shape = 's32[1]{0}', space=sflag, size = 0x4, scoped, tag = 'scoped memory for tpu_custom_call.1']
    #allocation5 [shape = 'u8[69632]{0}', space=vmem, size = 0x11000, scoped, tag = 'input window, operand 1, single buffered']
    #allocation6 [shape = 's32[1]{0}', space=sflag, size = 0x4, scoped, tag = 'scoped memory for tpu_custom_call.1']
    #allocation7 [shape = 'u8[4096]{0}', space=vmem, size = 0x1000, scoped, tag = 'input window, operand 2, single buffered']
    #allocation8 [shape = 'u8[4096]{0}', space=vmem, size = 0x1000, scoped, tag = 'output window, operand 0, single buffered']
    %8 = vsyncpa [#allocation3], 0
    %9 = vsyncpa [#allocation6], 0
    %10 = vsyncpa [#allocation4], 0
    // Predicated region
    $region2: #{tpu_custom_call.1} parent=1 // pred_check
      _
    $region3: #{tpu_custom_call.1} parent=1 // pred_check_branch
      %12 = sbr.rel (0) target = $region5
    $region4: #{tpu_custom_call.1} parent=1 // pred_region
      %s14 = ssub.s32 128, 128
      %15 = vsyncadd [#allocation3], %s14
      %s17 = sshll.u32 [#allocation2], 4
      %s18 = int_to_ptr.vmem [resolvable:$true] %s17
      %20 = dma.hbm_to_vmem [thread:$0]  %s0, 128, %s18, [#allocation3]
    $region5: #{tpu_custom_call.1} parent=1 // pred_fallthru
      _
    // Predicated region
    $region6: #{tpu_custom_call.1} parent=1 // pred_check
      _
    $region7: #{tpu_custom_call.1} parent=1 // pred_check_branch
      %22 = sbr.rel (0) target = $region9
    $region8: #{tpu_custom_call.1} parent=1 // pred_region
      %s24 = ssub.s32 2176, 2176
      %25 = vsyncadd [#allocation6], %s24
      %s26 = sshll.u32 [#allocation5], 4
      %s27 = int_to_ptr.vmem [resolvable:$true] %s26
      %32 = dma.hbm_to_vmem [thread:$0]  %s1, 2176, %s27, [#allocation6], 64, 64, 4
    $region9: #{tpu_custom_call.1} parent=1 // pred_fallthru
      _
    // Predicated region
    $region10: #{tpu_custom_call.1} parent=1 // pred_check
      _
    $region11: #{tpu_custom_call.1} parent=1 // pred_check_branch
      %34 = sbr.rel (0) target = $region13
    $region12: #{tpu_custom_call.1} parent=1 // pred_region
      %s36 = ssub.s32 128, 128
      %37 = vsyncadd [#allocation6], %s36
      %s39 = sshll.u32 [#allocation7], 4
      %s40 = int_to_ptr.vmem [resolvable:$true] %s39
      %42 = dma.hbm_to_vmem [thread:$0]  %s2, 128, %s40, [#allocation6]
    $region13: #{tpu_custom_call.1} parent=1 // pred_fallthru
      _
    // Predicated region
    $region14: #{tpu_custom_call.1} parent=1 // pred_check
      _
    $region15: #{tpu_custom_call.1} parent=1 // pred_check_branch
      %44 = sbr.rel (0) target = $region17
    $region16: #{tpu_custom_call.1} parent=1 // pred_region
      %45 = dma.done [#allocation3], 128
    $region17: #{tpu_custom_call.1} parent=1 // pred_fallthru
      _
    // Predicated region
    $region18: #{tpu_custom_call.1} parent=1 // pred_check
      _
    $region19: #{tpu_custom_call.1} parent=1 // pred_check_branch
      %47 = sbr.rel (0) target = $region21
    $region20: #{tpu_custom_call.1} parent=1 // pred_region
      %48 = dma.done [#allocation6], 2176
    $region21: #{tpu_custom_call.1} parent=1 // pred_fallthru
      _
    // Predicated region
    $region22: #{tpu_custom_call.1} parent=1 // pred_check
      _
    $region23: #{tpu_custom_call.1} parent=1 // pred_check_branch
      %50 = sbr.rel (0) target = $region25
    $region24: #{tpu_custom_call.1} parent=1 // pred_region
      %51 = dma.done [#allocation6], 128
    $region25: #{tpu_custom_call.1} parent=1 // pred_fallthru
      _
    %v53 = vld [vmem:[#allocation2] sm:$0xff]
    %v54 = vpack.c.bf16 %v53, %v53
    %v55 = vld [vmem:[#allocation5] sm:$0xf]
    %v56 = vld [vmem:[#allocation5 + $0x4] sm:$0xf]
    %v57 = vld [vmem:[#allocation5 + $0x8] sm:$0xf]
    %v58 = vld [vmem:[#allocation5 + $0xc] sm:$0xf]
    %v59 = vld [vmem:[#allocation5 + $0x10] sm:$0xf]
    %v60 = vld [vmem:[#allocation5 + $0x14] sm:$0xf]
    %v61 = vld [vmem:[#allocation5 + $0x18] sm:$0xf]
    %v62 = vld [vmem:[#allocation5 + $0x1c] sm:$0xf]
    %v63 = vld [vmem:[#allocation5 + $0x20] sm:$0xf]
    %v64 = vld [vmem:[#allocation5 + $0x24] sm:$0xf]
    %v65 = vld [vmem:[#allocation5 + $0x28] sm:$0xf]
    %v66 = vld [vmem:[#allocation5 + $0x2c] sm:$0xf]
    %v67 = vld [vmem:[#allocation5 + $0x30] sm:$0xf]
    %v68 = vld [vmem:[#allocation5 + $0x34] sm:$0xf]
    %v69 = vld [vmem:[#allocation5 + $0x38] sm:$0xf]
    %v70 = vld [vmem:[#allocation5 + $0x3c] sm:$0xf]
    %v71 = vld [vmem:[#allocation5 + $0x40] sm:$0xf]
    %v72 = vld [vmem:[#allocation5 + $0x44] sm:$0xf]
    %v73 = vld [vmem:[#allocation5 + $0x48] sm:$0xf]
    %v74 = vld [vmem:[#allocation5 + $0x4c] sm:$0xf]
    %v75 = vld [vmem:[#allocation5 + $0x50] sm:$0xf]
    %v76 = vld [vmem:[#allocation5 + $0x54] sm:$0xf]
    %v77 = vld [vmem:[#allocation5 + $0x58] sm:$0xf]
    %v78 = vld [vmem:[#allocation5 + $0x5c] sm:$0xf]
    %v79 = vld [vmem:[#allocation5 + $0x60] sm:$0xf]
    %v80 = vld [vmem:[#allocation5 + $0x64] sm:$0xf]
    %v81 = vld [vmem:[#allocation5 + $0x68] sm:$0xf]
    %v82 = vld [vmem:[#allocation5 + $0x6c] sm:$0xf]
    %v83 = vld [vmem:[#allocation5 + $0x70] sm:$0xf]
    %v84 = vld [vmem:[#allocation5 + $0x74] sm:$0xf]
    %v85 = vld [vmem:[#allocation5 + $0x78] sm:$0xf]
    %v86 = vld [vmem:[#allocation5 + $0x7c] sm:$0xf]
    %v87 = vld [vmem:[#allocation5 + $0x80] sm:$0xf]
    %v88 = vld [vmem:[#allocation5 + $0x84] sm:$0xf]
    %v89 = vld [vmem:[#allocation7] sm:$0x1]
    %v90 = vld [vmem:[#allocation7 + $0x1] sm:$0x1]
    %v91 = vld [vmem:[#allocation7 + $0x2] sm:$0x1]
    %v92 = vlaneseq
    %v93 = vshrl.u32 %v92, 7
    %v94 = vsub.s32 0, %v93
    %v95 = vrot.slane %v89, %v94
    %v98 = vunpack.c.l.b16 %v55
    %v99 = vunpack.c.l.b16 %v56
    %v100 = vpack.c.b16 %v99, %v98
    %vm102 = vcmask 130048
    %v104 = vsel %vm102, %v54, 0
    %106 = vmatprep.subr.bf16.mxu0 0
    %107 = vmatpush1.bf16.msra.mxu0 %v100
    %108 = vmatprep.subr.bf16.mxu0 0
    %109 = vmatpush1.bf16.msra.mxu0 0
    %110 = vmatprep.subr.bf16.mxu0 0
    %111 = vmatpush1.bf16.msra.mxu0 0
    %112 = vmatprep.subr.bf16.mxu0 0
    %113 = vmatpush1.bf16.msra.mxu0 0
    %114 = vmatprep.subr.bf16.mxu0 0
    %115 = vmatpush1.bf16.msra.mxu0 0
    %116 = vmatprep.subr.bf16.mxu0 0
    %117 = vmatpush1.bf16.msra.mxu0 0
    %118 = vmatprep.subr.bf16.mxu0 0
    %119 = vmatpush1.bf16.msra.mxu0 0
    %120 = vmatprep.subr.bf16.mxu0 0
    %121 = vmatpush1.bf16.msra.mxu0 0
    %122 = vmatprep.subr.bf16.mxu0 0
    %123 = vmatpush1.bf16.msra.mxu0 0
    %124 = vmatprep.subr.bf16.mxu0 0
    %125 = vmatpush1.bf16.msra.mxu0 0
    %126 = vmatprep.subr.bf16.mxu0 0
    %127 = vmatpush1.bf16.msra.mxu0 0
    %128 = vmatprep.subr.bf16.mxu0 0
    %129 = vmatpush1.bf16.msra.mxu0 0
    %130 = vmatprep.subr.bf16.mxu0 0
    %131 = vmatpush1.bf16.msra.mxu0 0
    %132 = vmatprep.subr.bf16.mxu0 0
    %133 = vmatpush1.bf16.msra.mxu0 0
    %134 = vmatprep.subr.bf16.mxu0 0
    %135 = vmatpush1.bf16.msra.mxu0 0
    %136 = vmatprep.subr.bf16.mxu0 0
    %137 = vmatpush1.bf16.msra.mxu0 0
    %138 = vmatprep.mubr.bf16.mxu0 0
    %139 = vmatmul.mubr.bf16.gmra.mrb[0].mxu0 %v104
    %v140 = vpop.f32.mrb[0].mxu0
    %v141 = vadd.f32 %v95, %v140
    %v142 = vpop.f32.mrb[0].mxu0
    %v143 = vpop.f32.mrb[0].mxu0
    %v144 = vpop.f32.mrb[0].mxu0
    %145 = vdwg.mxu0
    %v146 = vmax.f32 %v141, 0.0
    %v147 = vpack.c.bf16 %v146, %v146
    %v148 = vlaneseq
    %v149 = vshrl.u32 %v148, 7
    %v150 = vsub.s32 0, %v149
    %v151 = vrot.slane %v90, %v150
    %v168 = vunpack.c.l.b16 %v57
    %v169 = vunpack.c.l.b16 %v58
    %v170 = vunpack.c.l.b16 %v59
    %v171 = vunpack.c.l.b16 %v60
    %v172 = vunpack.c.l.b16 %v61
    %v173 = vunpack.c.l.b16 %v62
    %v174 = vunpack.c.l.b16 %v63
    %v175 = vunpack.c.l.b16 %v64
    %v176 = vunpack.c.l.b16 %v65
    %v177 = vunpack.c.l.b16 %v66
    %v178 = vunpack.c.l.b16 %v67
    %v179 = vunpack.c.l.b16 %v68
    %v180 = vunpack.c.l.b16 %v69
    %v181 = vunpack.c.l.b16 %v70
    %v182 = vunpack.c.l.b16 %v71
    %v183 = vunpack.c.l.b16 %v72
    %v184 = vpack.c.b16 %v169, %v168
    %v185 = vpack.c.b16 %v171, %v170
    %v186 = vpack.c.b16 %v173, %v172
    %v187 = vpack.c.b16 %v175, %v174
    %v188 = vpack.c.b16 %v177, %v176
    %v189 = vpack.c.b16 %v179, %v178
    %v190 = vpack.c.b16 %v181, %v180
    %v191 = vpack.c.b16 %v183, %v182
    %200 = vmatprep.subr.bf16.mxu0 0
    %201 = vmatpush1.bf16.msra.mxu0 %v184
    %202 = vmatprep.subr.bf16.mxu0 0
    %203 = vmatpush1.bf16.msra.mxu0 %v185
    %204 = vmatprep.subr.bf16.mxu0 0
    %205 = vmatpush1.bf16.msra.mxu0 %v186
    %206 = vmatprep.subr.bf16.mxu0 0
    %207 = vmatpush1.bf16.msra.mxu0 %v187
    %208 = vmatprep.subr.bf16.mxu0 0
    %209 = vmatpush1.bf16.msra.mxu0 %v188
    %210 = vmatprep.subr.bf16.mxu0 0
    %211 = vmatpush1.bf16.msra.mxu0 %v189
    %212 = vmatprep.subr.bf16.mxu0 0
    %213 = vmatpush1.bf16.msra.mxu0 %v190
    %214 = vmatprep.subr.bf16.mxu0 0
    %215 = vmatpush1.bf16.msra.mxu0 %v191
    %216 = vmatprep.subr.bf16.mxu0 0
    %217 = vmatpush1.bf16.msra.mxu0 0
    %218 = vmatprep.subr.bf16.mxu0 0
    %219 = vmatpush1.bf16.msra.mxu0 0
    %220 = vmatprep.subr.bf16.mxu0 0
    %221 = vmatpush1.bf16.msra.mxu0 0
    %222 = vmatprep.subr.bf16.mxu0 0
    %223 = vmatpush1.bf16.msra.mxu0 0
    %224 = vmatprep.subr.bf16.mxu0 0
    %225 = vmatpush1.bf16.msra.mxu0 0
    %226 = vmatprep.subr.bf16.mxu0 0
    %227 = vmatpush1.bf16.msra.mxu0 0
    %228 = vmatprep.subr.bf16.mxu0 0
    %229 = vmatpush1.bf16.msra.mxu0 0
    %230 = vmatprep.subr.bf16.mxu0 0
    %231 = vmatpush1.bf16.msra.mxu0 0
    %232 = vmatprep.mubr.bf16.mxu0 0
    %233 = vmatmul.mubr.bf16.gmra.mrb[0].mxu0 %v147
    %v234 = vpop.f32.mrb[0].mxu0
    %v235 = vadd.f32 %v151, %v234
    %v236 = vpop.f32.mrb[0].mxu0
    %v237 = vpop.f32.mrb[0].mxu0
    %v238 = vpop.f32.mrb[0].mxu0
    %239 = vdwg.mxu0
    %v240 = vmax.f32 %v235, 0.0
    %v241 = vpack.c.bf16 %v240, %v240
    %v242 = vlaneseq
    %v243 = vshrl.u32 %v242, 7
    %v244 = vsub.s32 0, %v243
    %v245 = vrot.slane %v91, %v244
    %v262 = vunpack.c.l.b16 %v73
    %v263 = vunpack.c.l.b16 %v74
    %v264 = vunpack.c.l.b16 %v75
    %v265 = vunpack.c.l.b16 %v76
    %v266 = vunpack.c.l.b16 %v77
    %v267 = vunpack.c.l.b16 %v78
    %v268 = vunpack.c.l.b16 %v79
    %v269 = vunpack.c.l.b16 %v80
    %v270 = vunpack.c.l.b16 %v81
    %v271 = vunpack.c.l.b16 %v82
    %v272 = vunpack.c.l.b16 %v83
    %v273 = vunpack.c.l.b16 %v84
    %v274 = vunpack.c.l.b16 %v85
    %v275 = vunpack.c.l.b16 %v86
    %v276 = vunpack.c.l.b16 %v87
    %v277 = vunpack.c.l.b16 %v88
    %v278 = vpack.c.b16 %v263, %v262
    %v279 = vpack.c.b16 %v265, %v264
    %v280 = vpack.c.b16 %v267, %v266
    %v281 = vpack.c.b16 %v269, %v268
    %v282 = vpack.c.b16 %v271, %v270
    %v283 = vpack.c.b16 %v273, %v272
    %v284 = vpack.c.b16 %v275, %v274
    %v285 = vpack.c.b16 %v277, %v276
    %294 = vmatprep.subr.bf16.mxu0 0
    %295 = vmatpush1.bf16.msra.mxu0 %v278
    %296 = vmatprep.subr.bf16.mxu0 0
    %297 = vmatpush1.bf16.msra.mxu0 %v279
    %298 = vmatprep.subr.bf16.mxu0 0
    %299 = vmatpush1.bf16.msra.mxu0 %v280
    %300 = vmatprep.subr.bf16.mxu0 0
    %301 = vmatpush1.bf16.msra.mxu0 %v281
    %302 = vmatprep.subr.bf16.mxu0 0
    %303 = vmatpush1.bf16.msra.mxu0 %v282
    %304 = vmatprep.subr.bf16.mxu0 0
    %305 = vmatpush1.bf16.msra.mxu0 %v283
    %306 = vmatprep.subr.bf16.mxu0 0
    %307 = vmatpush1.bf16.msra.mxu0 %v284
    %308 = vmatprep.subr.bf16.mxu0 0
    %309 = vmatpush1.bf16.msra.mxu0 %v285
    %310 = vmatprep.subr.bf16.mxu0 0
    %311 = vmatpush1.bf16.msra.mxu0 0
    %312 = vmatprep.subr.bf16.mxu0 0
    %313 = vmatpush1.bf16.msra.mxu0 0
    %314 = vmatprep.subr.bf16.mxu0 0
    %315 = vmatpush1.bf16.msra.mxu0 0
    %316 = vmatprep.subr.bf16.mxu0 0
    %317 = vmatpush1.bf16.msra.mxu0 0
    %318 = vmatprep.subr.bf16.mxu0 0
    %319 = vmatpush1.bf16.msra.mxu0 0
    %320 = vmatprep.subr.bf16.mxu0 0
    %321 = vmatpush1.bf16.msra.mxu0 0
    %322 = vmatprep.subr.bf16.mxu0 0
    %323 = vmatpush1.bf16.msra.mxu0 0
    %324 = vmatprep.subr.bf16.mxu0 0
    %325 = vmatpush1.bf16.msra.mxu0 0
    %326 = vmatprep.mubr.bf16.mxu0 0
    %327 = vmatmul.mubr.bf16.gmra.mrb[0].mxu0 %v241
    %v328 = vpop.f32.mrb[0].mxu0
    %v329 = vadd.f32 %v245, %v328
    %v330 = vpop.f32.mrb[0].mxu0
    %v331 = vpop.f32.mrb[0].mxu0
    %v332 = vpop.f32.mrb[0].mxu0
    %333 = vdwg.mxu0
    %v334 = vmax.f32 %v329, 0.0
    %vm335 = vcmask 64512
    %336 = vst.msk [vmem:[#allocation8] sm:$0xff] %vm335, %v334
    // Predicated region
    $region26: #{tpu_custom_call.1} parent=1 // pred_check
      _
    $region27: #{tpu_custom_call.1} parent=1 // pred_check_branch
      %338 = sbr.rel (0) target = $region29
    $region28: #{tpu_custom_call.1} parent=1 // pred_region
      %s340 = ssub.s32 128, 128
      %341 = vsyncadd [#allocation4], %s340
      %s343 = sshll.u32 [#allocation8], 4
      %s344 = int_to_ptr.vmem [resolvable:$true] %s343
      %346 = dma.vmem_to_hbm [thread:$0]  %s344, 128, %s3, [#allocation4]
    $region29: #{tpu_custom_call.1} parent=1 // pred_fallthru
      _
    // Predicated region
    $region30: #{tpu_custom_call.1} parent=1 // pred_check
      _
    $region31: #{tpu_custom_call.1} parent=1 // pred_check_branch
      %348 = sbr.rel (0) target = $region33
    $region32: #{tpu_custom_call.1} parent=1 // pred_region
      %349 = dma.done [#allocation4], 128
    $region33: #{tpu_custom_call.1} parent=1 // pred_fallthru
      _
    %350 = vsyncpa [#allocation3], 1
    %351 = vsyncpa [#allocation6], 1
    %352 = vsyncpa [#allocation4], 1

</llo_original>
